<compile_context>
chip_gen: v7x
topology: tpu7x:2x2x1
jax: 0.10.0
libtpu: 0.0.40
codegen_flags: <defaults>
</compile_context>

<pallas_src>
import math

import jax
import jax.numpy as jnp
from jax.experimental import pallas as pl
from jax.experimental.pallas import tpu as pltpu


def _attn_kernel(q_ref, k_ref, wt_ref, b_ref, o_ref):
    # q_ref, k_ref: (T, bb, H)   wt_ref: (H, H) == W^T   b_ref: (1, H) f32
    # o_ref: (bb, T) f32
    t, bb, h = q_ref.shape

    # One big MXU matmul: energy = key @ W^T + b, f32 accumulation.
    # (T, bb, H) -> (T*bb, H) is layout-free because bb % 8 == 0.
    k2 = k_ref[...].reshape(t * bb, h)
    energy = jnp.dot(k2, wt_ref[...], preferred_element_type=jnp.float32)
    energy = energy + b_ref[...]                       # (T*bb, H) f32
    energy3 = energy.reshape(t, bb, h)                 # layout-free split

    # las_score: reduce over hidden dim of query * energy (f32 elementwise).
    prod = q_ref[...].astype(jnp.float32) * energy3    # (T, bb, H)
    scores = jnp.sum(prod, axis=2)                     # (T, bb)

    # Small XLU transpose so the softmax axis (T) sits on the lane dimension
    # and the store is lane-dense.
    scores_bt = scores.T                               # (bb, T)

    # Numerically-stable softmax over T.
    m = jnp.max(scores_bt, axis=1, keepdims=True)      # (bb, 1)
    e = jnp.exp(scores_bt - m)
    denom = jnp.sum(e, axis=1, keepdims=True)          # (bb, 1)
    o_ref[...] = (e * pl.reciprocal(denom, approx=True)).astype(o_ref.dtype)


def _pick_bb(b_pad, t, h, itemsize):
    """Pick a batch-block size: multiple of 8, divides b_pad, modest VMEM."""
    # Keep one (q, k) block pair under ~4 MiB before double buffering.
    cap_elems = (4 << 20) // max(1, 2 * t * h * itemsize)
    cap = max(8, (cap_elems // 8) * 8)
    bb = min(b_pad, 32, cap)
    bb = max(8, (bb // 8) * 8)
    while b_pad % bb:
        bb -= 8
    return max(bb, 8)


def attn_forward(query_outputs, key_outputs, weight, bias):
    """query_outputs, key_outputs: (T, B, H); weight: (H, H); bias: (H,).

    Returns (B, 1, T) attention weights, matching PyTorch Attn.forward.
    """
    T, B, H = query_outputs.shape
    q = query_outputs
    k = key_outputs

    # Pad batch up to a multiple of 8 so per-block reshape/transpose are
    # layout-free (no pad / no copy when B is already a multiple of 8).
    B_pad = -(-B // 8) * 8
    if B_pad != B:
        pad = [(0, 0), (0, B_pad - B), (0, 0)]
        q = jnp.pad(q, pad)
        k = jnp.pad(k, pad)

    # Tiny parameter tensors: cheap to prepare on the XLA side.
    w_t = jnp.asarray(weight).astype(k.dtype).T        # (H, H) == W^T
    b2 = jnp.asarray(bias, jnp.float32).reshape(1, H)  # (1, H)

    bb = _pick_bb(B_pad, T, H, q.dtype.itemsize)
    grid = (B_pad // bb,)

    out = pl.pallas_call(
        _attn_kernel,
        out_shape=jax.ShapeDtypeStruct((B_pad, T), jnp.float32),
        grid_spec=pltpu.PrefetchScalarGridSpec(
            num_scalar_prefetch=0,
            grid=grid,
            in_specs=[
                pl.BlockSpec((T, bb, H), lambda i: (0, i, 0)),  # query block
                pl.BlockSpec((T, bb, H), lambda i: (0, i, 0)),  # key block
                pl.BlockSpec((H, H), lambda i: (0, 0)),         # W^T (shared)
                pl.BlockSpec((1, H), lambda i: (0, 0)),         # bias (shared)
            ],
            out_specs=pl.BlockSpec((bb, T), lambda i: (i, 0)),  # lane-dense
        ),
        compiler_params=pltpu.CompilerParams(
            dimension_semantics=("parallel",),
            vmem_limit_bytes=32 * 1024 * 1024,
        ),
    )(q, k, w_t, b2)                                    # (B_pad, T)

    # Drop padded batch rows; expand to PyTorch's (B, 1, T).
    return out[:B, None, :]


def attn_reference(query_outputs, key_outputs, weight, bias):
    """Plain-JAX reference mirroring the PyTorch forward exactly."""
    energy = jnp.einsum('tbh,jh->tbj', key_outputs, weight) + bias    # (T, B, H)
    scores = jnp.sum(query_outputs * energy, axis=2)                  # (T, B)
    scores = scores.T                                                 # (B, T)
    return jax.nn.softmax(scores, axis=1)[:, None, :]                 # (B, 1, T)


if __name__ == "__main__":
    T, B, H = 8, 2, 32  # seq len, batch, hidden_size

    root = jax.random.PRNGKey(0)
    kq, kk, kw, kb = jax.random.split(root, 4)

    query = jax.random.normal(kq, (T, B, H), jnp.float32)
    key_o = jax.random.normal(kk, (T, B, H), jnp.float32)

    # nn.Linear(H, H) default init: U(-1/sqrt(H), 1/sqrt(H)) for weight & bias
    bound = 1.0 / math.sqrt(H)
    weight = jax.random.uniform(kw, (H, H), jnp.float32, -bound, bound)
    bias = jax.random.uniform(kb, (H,), jnp.float32, -bound, bound)

    out = attn_forward(query, key_o, weight, bias)
    out = jax.block_until_ready(out)

    ref = attn_reference(query, key_o, weight, bias)
    assert out.shape == (B, 1, T), out.shape
    max_err = float(jnp.max(jnp.abs(out - ref)))
    assert max_err < 1e-2, f"max abs err {max_err}"

    print("KERNEL_OK")
</pallas_src>

<mosaic_0001>
module attributes {stable_mosaic.version = 11 : i64} {
  func.func @_attn_kernel(%arg0: i32, %arg1: memref<8x8x32xf32, #tpu.memory_space<vmem>>, %arg2: memref<8x8x32xf32, #tpu.memory_space<vmem>>, %arg3: memref<32x32xf32, #tpu.memory_space<vmem>>, %arg4: memref<1x32xf32, #tpu.memory_space<vmem>>, %arg5: memref<8x8xf32, #tpu.memory_space<vmem>>) attributes {dimension_semantics = [#tpu.dimension_semantics<parallel>], iteration_bounds = array<i64: 1>, scalar_prefetch = 0 : i64, scratch_operands = 0 : i64, tpu.core_type = #tpu.core_type<tc>, window_params = [{transform_indices = @transform_0, window_bounds = array<i64: 8, 8, 32>}, {transform_indices = @transform_1, window_bounds = array<i64: 8, 8, 32>}, {pipeline_mode = #tpu.pipeline_mode<synchronous>, transform_indices = @transform_2, window_bounds = array<i64: 32, 32>}, {pipeline_mode = #tpu.pipeline_mode<synchronous>, transform_indices = @transform_3, window_bounds = array<i64: 1, 32>}, {transform_indices = @transform_4, window_bounds = array<i64: 8, 8>}]} {
    %c0 = arith.constant 0 : index
    %c0_0 = arith.constant 0 : index
    %c0_1 = arith.constant 0 : index
    %0 = vector.load %arg2[%c0, %c0_0, %c0_1] : memref<8x8x32xf32, #tpu.memory_space<vmem>>, vector<8x8x32xf32>
    %1 = vector.shape_cast %0 : vector<8x8x32xf32> to vector<64x32xf32>
    %c0_2 = arith.constant 0 : index
    %c0_3 = arith.constant 0 : index
    %2 = vector.load %arg3[%c0_2, %c0_3] : memref<32x32xf32, #tpu.memory_space<vmem>>, vector<32x32xf32>
    %cst = arith.constant dense<0.000000e+00> : vector<64x32xf32>
    %3 = tpu.matmul %1, %2, %cst {dimension_numbers = #tpu.dot_dimension_numbers<[1], [0], [0], [1], [0, 0, 1, 1], [], []>} : vector<64x32xf32>, vector<32x32xf32>, vector<64x32xf32> -> vector<64x32xf32>
    %c0_4 = arith.constant 0 : index
    %c0_5 = arith.constant 0 : index
    %4 = vector.load %arg4[%c0_4, %c0_5] : memref<1x32xf32, #tpu.memory_space<vmem>>, vector<1x32xf32>
    %5 = vector.broadcast %4 : vector<1x32xf32> to vector<64x32xf32>
    %6 = arith.addf %3, %5 : vector<64x32xf32>
    %7 = vector.shape_cast %6 : vector<64x32xf32> to vector<8x8x32xf32>
    %c0_6 = arith.constant 0 : index
    %c0_7 = arith.constant 0 : index
    %c0_8 = arith.constant 0 : index
    %8 = vector.load %arg1[%c0_6, %c0_7, %c0_8] : memref<8x8x32xf32, #tpu.memory_space<vmem>>, vector<8x8x32xf32>
    %9 = arith.mulf %8, %7 : vector<8x8x32xf32>
    %cst_9 = arith.constant dense<0.000000e+00> : vector<8x8xf32>
    %10 = vector.multi_reduction <add>, %9, %cst_9 [2] : vector<8x8x32xf32> to vector<8x8xf32>
    %11 = tpu.transpose %10, [1, 0] : vector<8x8xf32> -> vector<8x8xf32>
    %cst_10 = arith.constant dense<0xFF800000> : vector<8xf32>
    %12 = vector.multi_reduction <maximumf>, %11, %cst_10 [1] : vector<8x8xf32> to vector<8xf32>
    %13 = vector.shape_cast %12 : vector<8xf32> to vector<8x1xf32>
    %14 = vector.broadcast %13 : vector<8x1xf32> to vector<8x8xf32>
    %15 = arith.subf %11, %14 : vector<8x8xf32>
    %16 = math.exp %15 : vector<8x8xf32>
    %cst_11 = arith.constant dense<0.000000e+00> : vector<8xf32>
    %17 = vector.multi_reduction <add>, %16, %cst_11 [1] : vector<8x8xf32> to vector<8xf32>
    %18 = vector.shape_cast %17 : vector<8xf32> to vector<8x1xf32>
    %19 = tpu.reciprocal %18 {approx = true} : vector<8x1xf32> -> vector<8x1xf32>
    %20 = vector.broadcast %19 : vector<8x1xf32> to vector<8x8xf32>
    %21 = arith.mulf %16, %20 : vector<8x8xf32>
    %c0_12 = arith.constant 0 : index
    %c0_13 = arith.constant 0 : index
    %22 = vector.load %arg5[%c0_12, %c0_13] : memref<8x8xf32, #tpu.memory_space<vmem>>, vector<8x8xf32>
    tpu.vector_store %arg5[%c0_12, %c0_13], %21 {strides = array<i32>} : memref<8x8xf32, #tpu.memory_space<vmem>>, vector<8x8xf32>,
    return
  }
  func.func @transform_0(%arg0: i32) -> (i32, i32, i32) {
    %c0_i32 = arith.constant 0 : i32
    %c0_i32_0 = arith.constant 0 : i32
    %c0_i32_1 = arith.constant 0 : i32
    return %c0_i32, %arg0, %c0_i32_0 : i32, i32, i32
  }
  func.func @transform_1(%arg0: i32) -> (i32, i32, i32) {
    %c0_i32 = arith.constant 0 : i32
    %c0_i32_0 = arith.constant 0 : i32
    %c0_i32_1 = arith.constant 0 : i32
    return %c0_i32, %arg0, %c0_i32_0 : i32, i32, i32
  }
  func.func @transform_2(%arg0: i32) -> (i32, i32) {
    %c0_i32 = arith.constant 0 : i32
    %c0_i32_0 = arith.constant 0 : i32
    %c0_i32_1 = arith.constant 0 : i32
    return %c0_i32, %c0_i32_0 : i32, i32
  }
  func.func @transform_3(%arg0: i32) -> (i32, i32) {
    %c0_i32 = arith.constant 0 : i32
    %c0_i32_0 = arith.constant 0 : i32
    %c0_i32_1 = arith.constant 0 : i32
    return %c0_i32, %c0_i32_0 : i32, i32
  }
  func.func @transform_4(%arg0: i32) -> (i32, i32) {
    %c0_i32 = arith.constant 0 : i32
    %c0_i32_0 = arith.constant 0 : i32
    return %arg0, %c0_i32 : i32, i32
  }
}

</mosaic_0001>

<llo_original>
// kernel: tpu_custom_call.1
$region0: #{tpu_custom_call.1}
  #allocation0 [shape = 'u32[]', space=smem, size = 0x4, offset = 0x4, fixed_abs, tag = 'smem constant byte address 0x4 - core index']
  #allocation1 [shape = 'u32[144,128]{1,0:T(1,128)}', space=vmem, size = 0x12000, scoped, tag = 'internal scratch']
  %s0 = inlined_call_operand.hbm [shape: f32[8,8,32], index: 0, kind: input, shape index: {}]
  %s1 = inlined_call_operand.hbm [shape: f32[8,8,32], index: 1, kind: input, shape index: {}]
  %s2 = inlined_call_operand.hbm [shape: f32[32,32], index: 2, kind: input, shape index: {}]
  %s3 = inlined_call_operand.vmem [shape: f32[1,32], index: 3, kind: input, shape index: {}]
  %s4 = inlined_call_operand.hbm [shape: f32[8,8], index: 4, kind: output, shape index: {}]
  %s5 = sld [smem:[#allocation0]]
  $region38: #{tpu_custom_call.1} parent=0
    _
  %s7 = ssub.s32 1, %s5
  %s8 = scalar_select 0, %s7, %s5
  $region1: #{tpu_custom_call.1} parent=0
    #allocation2 [shape = 'u8[32768]{0}', space=vmem, size = 0x8000, scoped, tag = 'input window, operand 0, single buffered']
    #allocation3 [shape = 's32[1]{0}', space=sflag, size = 0x4, scoped, tag = 'scoped memory for tpu_custom_call.1']
    #allocation4 [shape = 's32[1]{0}', space=sflag, size = 0x4, scoped, tag = 'scoped memory for tpu_custom_call.1']
    #allocation5 [shape = 'u8[32768]{0}', space=vmem, size = 0x8000, scoped, tag = 'input window, operand 1, single buffered']
    #allocation6 [shape = 's32[1]{0}', space=sflag, size = 0x4, scoped, tag = 'scoped memory for tpu_custom_call.1']
    #allocation7 [shape = 'u8[16384]{0}', space=vmem, size = 0x4000, scoped, tag = 'input window, operand 2, single buffered']
    #allocation8 [shape = 'u8[4096]{0}', space=vmem, size = 0x1000, scoped, tag = 'output window, operand 0, single buffered']
    %9 = vsyncpa [#allocation3], 0
    %10 = vsyncpa [#allocation6], 0
    %11 = vsyncpa [#allocation4], 0
    // Predicated region
    $region2: #{tpu_custom_call.1} parent=1 // pred_check
      _
    $region3: #{tpu_custom_call.1} parent=1 // pred_check_branch
      %13 = sbr.rel (0) target = $region5
    $region4: #{tpu_custom_call.1} parent=1 // pred_region
      %s15 = ssub.s32 1024, 1024
      %16 = vsyncadd [#allocation3], %s15
      %s17 = sshll.u32 [#allocation2], 4
      %s18 = int_to_ptr.vmem [resolvable:$true] %s17
      %23 = dma.hbm_to_vmem [thread:$0]  %s0, 1024, %s18, [#allocation3], 128, 128, 8
    $region5: #{tpu_custom_call.1} parent=1 // pred_fallthru
      _
    // Predicated region
    $region6: #{tpu_custom_call.1} parent=1 // pred_check
      _
    $region7: #{tpu_custom_call.1} parent=1 // pred_check_branch
      %25 = sbr.rel (0) target = $region9
    $region8: #{tpu_custom_call.1} parent=1 // pred_region
      %s27 = ssub.s32 1024, 1024
      %28 = vsyncadd [#allocation6], %s27
      %s29 = sshll.u32 [#allocation5], 4
      %s30 = int_to_ptr.vmem [resolvable:$true] %s29
      %35 = dma.hbm_to_vmem [thread:$0]  %s1, 1024, %s30, [#allocation6], 128, 128, 8
    $region9: #{tpu_custom_call.1} parent=1 // pred_fallthru
      _
    // Predicated region
    $region10: #{tpu_custom_call.1} parent=1 // pred_check
      _
    $region11: #{tpu_custom_call.1} parent=1 // pred_check_branch
      %37 = sbr.rel (0) target = $region13
    $region12: #{tpu_custom_call.1} parent=1 // pred_region
      %s39 = ssub.s32 512, 512
      %40 = vsyncadd [#allocation6], %s39
      %s41 = sshll.u32 [#allocation7], 4
      %s42 = int_to_ptr.vmem [resolvable:$true] %s41
      %47 = dma.hbm_to_vmem [thread:$0]  %s2, 512, %s42, [#allocation6], 128, 128, 8
    $region13: #{tpu_custom_call.1} parent=1 // pred_fallthru
      _
    // Predicated region
    $region14: #{tpu_custom_call.1} parent=1 // pred_check
      _
    $region15: #{tpu_custom_call.1} parent=1 // pred_check_branch
      %49 = sbr.rel (0) target = $region17
    $region16: #{tpu_custom_call.1} parent=1 // pred_region
      _
    $region17: #{tpu_custom_call.1} parent=1 // pred_fallthru
      _
    // Predicated region
    $region18: #{tpu_custom_call.1} parent=1 // pred_check
      _
    $region19: #{tpu_custom_call.1} parent=1 // pred_check_branch
      %51 = sbr.rel (0) target = $region21
    $region20: #{tpu_custom_call.1} parent=1 // pred_region
      %52 = dma.done [#allocation3], 1024
    $region21: #{tpu_custom_call.1} parent=1 // pred_fallthru
      _
    // Predicated region
    $region22: #{tpu_custom_call.1} parent=1 // pred_check
      _
    $region23: #{tpu_custom_call.1} parent=1 // pred_check_branch
      %54 = sbr.rel (0) target = $region25
    $region24: #{tpu_custom_call.1} parent=1 // pred_region
      %55 = dma.done [#allocation6], 1024
    $region25: #{tpu_custom_call.1} parent=1 // pred_fallthru
      _
    // Predicated region
    $region26: #{tpu_custom_call.1} parent=1 // pred_check
      _
    $region27: #{tpu_custom_call.1} parent=1 // pred_check_branch
      %57 = sbr.rel (0) target = $region29
    $region28: #{tpu_custom_call.1} parent=1 // pred_region
      %58 = dma.done [#allocation6], 512
    $region29: #{tpu_custom_call.1} parent=1 // pred_fallthru
      _
    %v59 = vld [vmem:[#allocation5] sm:$0xff]
    %v60 = vld [vmem:[#allocation5 + $0x8] sm:$0xff]
    %v61 = vld [vmem:[#allocation5 + $0x10] sm:$0xff]
    %v62 = vld [vmem:[#allocation5 + $0x18] sm:$0xff]
    %v63 = vld [vmem:[#allocation5 + $0x20] sm:$0xff]
    %v64 = vld [vmem:[#allocation5 + $0x28] sm:$0xff]
    %v65 = vld [vmem:[#allocation5 + $0x30] sm:$0xff]
    %v66 = vld [vmem:[#allocation5 + $0x38] sm:$0xff]
    %v67 = vld [vmem:[#allocation7] sm:$0xff]
    %v68 = vld [vmem:[#allocation7 + $0x8] sm:$0xff]
    %v69 = vld [vmem:[#allocation7 + $0x10] sm:$0xff]
    %v70 = vld [vmem:[#allocation7 + $0x18] sm:$0xff]
    %v71 = vld [vmem:[%s3] sm:$0x1]
    %v73 = vlaneseq
    %v74 = vshrl.u32 %v73, 7
    %v75 = vsub.s32 0, %v74
    %v76 = vrot.slane %v71, %v75
    %vm78 = vcmask 261120
    %v80 = vsel %vm78, %v59, 0
    %v83 = vsel %vm78, %v60, 0
    %v86 = vsel %vm78, %v61, 0
    %v89 = vsel %vm78, %v62, 0
    %v92 = vsel %vm78, %v63, 0
    %v95 = vsel %vm78, %v64, 0
    %v98 = vsel %vm78, %v65, 0
    %v101 = vsel %vm78, %v66, 0
    %103 = vmatprep.subr.mxu0 0.0
    %104 = vmatpush1.msra.mxu0 %v67
    %105 = vmatprep.subr.mxu0 0.0
    %106 = vmatpush1.msra.mxu0 %v68
    %107 = vmatprep.subr.mxu0 0.0
    %108 = vmatpush1.msra.mxu0 %v69
    %109 = vmatprep.subr.mxu0 0.0
    %110 = vmatpush1.msra.mxu0 %v70
    %111 = vmatprep.subr.mxu0 0.0
    %112 = vmatpush1.msra.mxu0 0.0
    %113 = vmatprep.subr.mxu0 0.0
    %114 = vmatpush1.msra.mxu0 0.0
    %115 = vmatprep.subr.mxu0 0.0
    %116 = vmatpush1.msra.mxu0 0.0
    %117 = vmatprep.subr.mxu0 0.0
    %118 = vmatpush1.msra.mxu0 0.0
    %119 = vmatprep.subr.mxu0 0.0
    %120 = vmatpush1.msra.mxu0 0.0
    %121 = vmatprep.subr.mxu0 0.0
    %122 = vmatpush1.msra.mxu0 0.0
    %123 = vmatprep.subr.mxu0 0.0
    %124 = vmatpush1.msra.mxu0 0.0
    %125 = vmatprep.subr.mxu0 0.0
    %126 = vmatpush1.msra.mxu0 0.0
    %127 = vmatprep.subr.mxu0 0.0
    %128 = vmatpush1.msra.mxu0 0.0
    %129 = vmatprep.subr.mxu0 0.0
    %130 = vmatpush1.msra.mxu0 0.0
    %131 = vmatprep.subr.mxu0 0.0
    %132 = vmatpush1.msra.mxu0 0.0
    %133 = vmatprep.subr.mxu0 0.0
    %134 = vmatpush1.msra.mxu0 0.0
    %135 = vmatprep.subr.mxu0 0.0
    %136 = vmatpush1.msra.mxu0 0.0
    %137 = vmatprep.subr.mxu0 0.0
    %138 = vmatpush1.msra.mxu0 0.0
    %139 = vmatprep.subr.mxu0 0.0
    %140 = vmatpush1.msra.mxu0 0.0
    %141 = vmatprep.subr.mxu0 0.0
    %142 = vmatpush1.msra.mxu0 0.0
    %143 = vmatprep.subr.mxu0 0.0
    %144 = vmatpush1.msra.mxu0 0.0
    %145 = vmatprep.subr.mxu0 0.0
    %146 = vmatpush1.msra.mxu0 0.0
    %147 = vmatprep.subr.mxu0 0.0
    %148 = vmatpush1.msra.mxu0 0.0
    %149 = vmatprep.subr.mxu0 0.0
    %150 = vmatpush1.msra.mxu0 0.0
    %151 = vmatprep.subr.mxu0 0.0
    %152 = vmatpush1.msra.mxu0 0.0
    %153 = vmatprep.subr.mxu0 0.0
    %154 = vmatpush1.msra.mxu0 0.0
    %155 = vmatprep.subr.mxu0 0.0
    %156 = vmatpush1.msra.mxu0 0.0
    %157 = vmatprep.subr.mxu0 0.0
    %158 = vmatpush1.msra.mxu0 0.0
    %159 = vmatprep.subr.mxu0 0.0
    %160 = vmatpush1.msra.mxu0 0.0
    %161 = vmatprep.subr.mxu0 0.0
    %162 = vmatpush1.msra.mxu0 0.0
    %163 = vmatprep.subr.mxu0 0.0
    %164 = vmatpush1.msra.mxu0 0.0
    %165 = vmatprep.subr.mxu0 0.0
    %166 = vmatpush1.msra.mxu0 0.0
    %167 = vmatprep.mubr.f32.mxu0 0.0
    %168 = vmatmul.mubr.f32.gmra.mrb[0].mxu0 %v80
    %v169 = vpop.f32.mrb[0].mxu0
    %v170 = vadd.f32 %v76, %v169
    %v171 = vpop.f32.mrb[0].mxu0
    %172 = vmatprep.mubr.f32.mxu0 0.0
    %173 = vmatmul.mubr.f32.gmra.mrb[0].mxu0 %v83
    %v174 = vpop.f32.mrb[0].mxu0
    %v175 = vadd.f32 %v76, %v174
    %v176 = vpop.f32.mrb[0].mxu0
    %177 = vmatprep.mubr.f32.mxu0 0.0
    %178 = vmatmul.mubr.f32.gmra.mrb[0].mxu0 %v86
    %v179 = vpop.f32.mrb[0].mxu0
    %v180 = vadd.f32 %v76, %v179
    %v181 = vpop.f32.mrb[0].mxu0
    %182 = vmatprep.mubr.f32.mxu0 0.0
    %183 = vmatmul.mubr.f32.gmra.mrb[0].mxu0 %v89
    %v184 = vpop.f32.mrb[0].mxu0
    %v185 = vadd.f32 %v76, %v184
    %v186 = vpop.f32.mrb[0].mxu0
    %187 = vmatprep.mubr.f32.mxu0 0.0
    %188 = vmatmul.mubr.f32.gmra.mrb[0].mxu0 %v92
    %v189 = vpop.f32.mrb[0].mxu0
    %v190 = vadd.f32 %v76, %v189
    %v191 = vpop.f32.mrb[0].mxu0
    %192 = vmatprep.mubr.f32.mxu0 0.0
    %193 = vmatmul.mubr.f32.gmra.mrb[0].mxu0 %v95
    %v194 = vpop.f32.mrb[0].mxu0
    %v195 = vadd.f32 %v76, %v194
    %v196 = vpop.f32.mrb[0].mxu0
    %197 = vmatprep.mubr.f32.mxu0 0.0
    %198 = vmatmul.mubr.f32.gmra.mrb[0].mxu0 %v98
    %v199 = vpop.f32.mrb[0].mxu0
    %v200 = vadd.f32 %v76, %v199
    %v201 = vpop.f32.mrb[0].mxu0
    %202 = vmatprep.mubr.f32.mxu0 0.0
    %203 = vmatmul.mubr.f32.gmra.mrb[0].mxu0 %v101
    %v204 = vpop.f32.mrb[0].mxu0
    %v205 = vadd.f32 %v76, %v204
    %v206 = vpop.f32.mrb[0].mxu0
    %207 = vdwg.mxu0
    %v208 = vld [vmem:[#allocation2] sm:$0xff]
    %v209 = vld [vmem:[#allocation2 + $0x8] sm:$0xff]
    %v210 = vld [vmem:[#allocation2 + $0x10] sm:$0xff]
    %v211 = vld [vmem:[#allocation2 + $0x18] sm:$0xff]
    %v212 = vld [vmem:[#allocation2 + $0x20] sm:$0xff]
    %v213 = vld [vmem:[#allocation2 + $0x28] sm:$0xff]
    %v214 = vld [vmem:[#allocation2 + $0x30] sm:$0xff]
    %v215 = vld [vmem:[#allocation2 + $0x38] sm:$0xff]
    %v216 = vmul.f32 %v208, %v170
    %v217 = vmul.f32 %v209, %v175
    %v218 = vmul.f32 %v210, %v180
    %v219 = vmul.f32 %v211, %v185
    %v220 = vmul.f32 %v212, %v190
    %v221 = vmul.f32 %v213, %v195
    %v222 = vmul.f32 %v214, %v200
    %v223 = vmul.f32 %v215, %v205
    %v224 = vsel %vm78, %v216, 0.0
    %225 = vadd.xlane.f32.xlu0 %v224
    %v226 = vpop.xlane.xlu0 %225
    %v227 = vsel %vm78, %v217, 0.0
    %228 = vadd.xlane.f32.xlu0 %v227
    %v229 = vpop.xlane.xlu0 %228
    %v230 = vsel %vm78, %v218, 0.0
    %231 = vadd.xlane.f32.xlu0 %v230
    %v232 = vpop.xlane.xlu0 %231
    %v233 = vsel %vm78, %v219, 0.0
    %234 = vadd.xlane.f32.xlu0 %v233
    %v235 = vpop.xlane.xlu0 %234
    %v236 = vsel %vm78, %v220, 0.0
    %237 = vadd.xlane.f32.xlu0 %v236
    %v238 = vpop.xlane.xlu0 %237
    %v239 = vsel %vm78, %v221, 0.0
    %240 = vadd.xlane.f32.xlu0 %v239
    %v241 = vpop.xlane.xlu0 %240
    %v242 = vsel %vm78, %v222, 0.0
    %243 = vadd.xlane.f32.xlu0 %v242
    %v244 = vpop.xlane.xlu0 %243
    %v245 = vsel %vm78, %v223, 0.0
    %246 = vadd.xlane.f32.xlu0 %v245
    %v247 = vpop.xlane.xlu0 %246
    %v256 = vlaneseq
    %v257 = vand.u32 %v256, 127
    %v258 = vlaneseq
    %v259 = vshrl.u32 %v258, 7
    %v260 = vsub.s32 %v257, %v259
    %v261 = vrot.slane %v226, %v260
    %v262 = vlaneseq
    %v263 = vshrl.u32 %v262, 7
    %v264 = vsub.s32 %v257, %v263
    %v265 = vrot.slane %v229, %v264
    %v266 = vlaneseq
    %v267 = vshrl.u32 %v266, 7
    %v268 = vsub.s32 %v257, %v267
    %v269 = vrot.slane %v232, %v268
    %v270 = vlaneseq
    %v271 = vshrl.u32 %v270, 7
    %v272 = vsub.s32 %v257, %v271
    %v273 = vrot.slane %v235, %v272
    %v274 = vlaneseq
    %v275 = vshrl.u32 %v274, 7
    %v276 = vsub.s32 %v257, %v275
    %v277 = vrot.slane %v238, %v276
    %v278 = vlaneseq
    %v279 = vshrl.u32 %v278, 7
    %v280 = vsub.s32 %v257, %v279
    %v281 = vrot.slane %v241, %v280
    %v282 = vlaneseq
    %v283 = vshrl.u32 %v282, 7
    %v284 = vsub.s32 %v257, %v283
    %v285 = vrot.slane %v244, %v284
    %v286 = vlaneseq
    %v287 = vshrl.u32 %v286, 7
    %v288 = vsub.s32 %v257, %v287
    %v289 = vrot.slane %v247, %v288
    %vm290 = vcmask 1041409
    %v291 = vsel %vm290, %v265, %v261
    %vm292 = vcmask 1042434
    %v293 = vsel %vm292, %v269, %v291
    %vm294 = vcmask 1043459
    %v295 = vsel %vm294, %v273, %v293
    %vm296 = vcmask 1044484
    %v297 = vsel %vm296, %v277, %v295
    %vm298 = vcmask 1045509
    %v299 = vsel %vm298, %v281, %v297
    %vm300 = vcmask 1046534
    %v301 = vsel %vm300, %v285, %v299
    %vm302 = vcmask 1047559
    %v303 = vsel %vm302, %v289, %v301
    %305 = vxpose.xlu0.b32.start [1/16] %v303, 128
    %306 = vxpose.xlu0.b32.cont [2/16] 0.0, 128
    %307 = vxpose.xlu0.b32.cont [3/16] 0.0, 128
    %308 = vxpose.xlu0.b32.cont [4/16] 0.0, 128
    %309 = vxpose.xlu0.b32.cont [5/16] 0.0, 128
    %310 = vxpose.xlu0.b32.cont [6/16] 0.0, 128
    %311 = vxpose.xlu0.b32.cont [7/16] 0.0, 128
    %312 = vxpose.xlu0.b32.cont [8/16] 0.0, 128
    %313 = vxpose.xlu0.b32.cont [9/16] 0.0, 128
    %314 = vxpose.xlu0.b32.cont [10/16] 0.0, 128
    %315 = vxpose.xlu0.b32.cont [11/16] 0.0, 128
    %316 = vxpose.xlu0.b32.cont [12/16] 0.0, 128
    %317 = vxpose.xlu0.b32.cont [13/16] 0.0, 128
    %318 = vxpose.xlu0.b32.cont [14/16] 0.0, 128
    %319 = vxpose.xlu0.b32.cont [15/16] 0.0, 128
    %320 = vxpose.xlu0.b32.end [16/16] 0.0, 128
    %v321 = vpop.trf.xlu0
    %v322 = vpop.trf.xlu0
    %v323 = vpop.trf.xlu0
    %v324 = vpop.trf.xlu0
    %v325 = vpop.trf.xlu0
    %v326 = vpop.trf.xlu0
    %v327 = vpop.trf.xlu0
    %v328 = vpop.trf.xlu0
    %v329 = vpop.trf.xlu0
    %v330 = vpop.trf.xlu0
    %v331 = vpop.trf.xlu0
    %v332 = vpop.trf.xlu0
    %v333 = vpop.trf.xlu0
    %v334 = vpop.trf.xlu0
    %v335 = vpop.trf.xlu0
    %v336 = vpop.trf.xlu0
    %vm337 = vcmask 64512
    %v338 = vsel %vm337, %v321, -inf
    %339 = vmax.xlane.f32.xlu0 %v338
    %v340 = vpop.xlane.xlu0 %339
    %v341 = vsub.f32 %v321, %v340
    %v342 = vmul.f32 %v341, 1.442695
    %v343 = vpow.pop %v342
    %v344 = vsel %vm337, %v343, 0.0
    %345 = vadd.xlane.f32.xlu0 %v344
    %v346 = vpop.xlane.xlu0 %345
    %v347 = vrcp.pop %v346
    %v348 = vmul.f32 %v343, %v347
    %349 = vst.msk [vmem:[#allocation8] sm:$0xff] %vm337, %v348
    // Predicated region
    $region30: #{tpu_custom_call.1} parent=1 // pred_check
      _
    $region31: #{tpu_custom_call.1} parent=1 // pred_check_branch
      %351 = sbr.rel (0) target = $region33
    $region32: #{tpu_custom_call.1} parent=1 // pred_region
      %s353 = ssub.s32 128, 128
      %354 = vsyncadd [#allocation4], %s353
      %s356 = sshll.u32 [#allocation8], 4
      %s357 = int_to_ptr.vmem [resolvable:$true] %s356
      %359 = dma.vmem_to_hbm [thread:$0]  %s357, 128, %s4, [#allocation4]
    $region33: #{tpu_custom_call.1} parent=1 // pred_fallthru
      _
    // Predicated region
    $region34: #{tpu_custom_call.1} parent=1 // pred_check
      _
    $region35: #{tpu_custom_call.1} parent=1 // pred_check_branch
      %361 = sbr.rel (0) target = $region37
    $region36: #{tpu_custom_call.1} parent=1 // pred_region
      %362 = dma.done [#allocation4], 128
    $region37: #{tpu_custom_call.1} parent=1 // pred_fallthru
      _
    %363 = vsyncpa [#allocation3], 1
    %364 = vsyncpa [#allocation6], 1
    %365 = vsyncpa [#allocation4], 1

</llo_original>
